<compile_context>
chip_gen: v5e
topology: v5e:2x2
jax: 0.10.0
libtpu: 0.0.40
codegen_flags: <defaults>
</compile_context>

<pallas_src>
import jax
import jax.numpy as jnp
from jax.experimental import pallas as pl
from jax.experimental.pallas import tpu as pltpu

LOG_STD_MAX = 2.0
LOG_STD_MIN = -5.0


def _actor_slow_linear_kernel(obs_ref, wcat_ref, pls_ref, mm_ref, ls_ref):
    """Fused ActorSlowLinear forward body.

    mm_ref : [bt, 2A] = obs @ [W_mean^T | W_logstd^T]  (one MXU matmul)
    ls_ref : [bt,  A] = LOG_STD_MIN + 0.5*(MAX-MIN)*(tanh(prev_log_std)+1)
    Both outputs are full-ref, lane-offset-0 stores (no masked vst).
    """
    mm = jnp.dot(obs_ref[...], wcat_ref[...], preferred_element_type=jnp.float32)
    mm_ref[...] = mm.astype(mm_ref.dtype)

    # tanh -> EUP slot, affine -> VPU; both overlap the MXU matmul for free.
    # TODO(synk): if profiling at large B*A shows the single EUP slot binding
    # before the MXU, hoist this squash out of the kernel and let XLA fuse it.
    t = jnp.tanh(pls_ref[...].astype(jnp.float32))
    squashed = LOG_STD_MIN + 0.5 * (LOG_STD_MAX - LOG_STD_MIN) * (t + 1.0)
    ls_ref[...] = squashed.astype(ls_ref.dtype)


def prepare_fused_weight(w_mean, w_logstd):
    """Fuse the two bias-free heads into one [D, 2A] weight.

    w_mean / w_logstd are in PyTorch nn.Linear layout [A, D].
    Call this ONCE at parameter-preparation time and reuse the result across
    forward calls (avoids a full weight HBM write+read every step).
    """
    return jnp.concatenate([jnp.transpose(w_mean), jnp.transpose(w_logstd)], axis=1)


def _pick_batch_tile(B):
    """Largest MXU-friendly batch tile that still yields >= 2 grid steps."""
    # Prefer 256-multiples (v6e 2x256^2 MXU), then 128 (v5e 4x128^2 MXU),
    # while keeping >= 2 steps so v7x's 2 TensorCores both get work.
    for cand in (512, 256, 128):
        if B >= 2 * cand and B % cand == 0:
            return cand
    # Moderate batches: split in half (stays sublane-8 aligned) -> grid_b = 2.
    if B >= 16 and B % 16 == 0:
        return B // 2
    # Tiny batches: one full-extent block (satisfies (8,128)-or-full rule).
    return B


def _xla_forward(obs, w_cat, prev_mean, prev_log_std):
    """Plain-XLA fallback for launch-overhead-bound (tiny) shapes."""
    A = w_cat.shape[1] // 2
    mm = jnp.dot(obs, w_cat, preferred_element_type=jnp.float32)
    new_mean, new_log_std = mm[:, :A], mm[:, A:]
    log_std = LOG_STD_MIN + 0.5 * (LOG_STD_MAX - LOG_STD_MIN) * (
        jnp.tanh(prev_log_std) + 1.0)
    return prev_mean, log_std, [(new_mean, new_log_std)]


def actor_slow_linear_forward(obs, w_cat, prev_mean, prev_log_std,
                              *, use_pallas=None, compute_dtype=None):
    """Pallas forward for ActorSlowLinear.

    obs:          [B, D] float32
    w_cat:        [D, 2A] float32 fused weight (from prepare_fused_weight)
    prev_mean:    [B, A] float32  (hidden_activations[-1][0])
    prev_log_std: [B, A] float32  (hidden_activations[-1][1])

    Returns (mean, log_std, [(new_mean, new_log_std)]) exactly like the module.
    (The module's `self.last_obs` deque bookkeeping is Python-side training
    state and is not part of the numeric forward pass.)
    """
    B, D = obs.shape
    two_a = w_cat.shape[1]
    A = two_a // 2

    if use_pallas is None:
        # Below this the pallas_call is pure launch/DMA overhead; let XLA fuse.
        use_pallas = (B >= 128) and (two_a >= 128)
    if not use_pallas:
        return _xla_forward(obs, w_cat, prev_mean, prev_log_std)

    if compute_dtype is None:
        # bf16 operands halve HBM->VMEM traffic and run at MXU-native rate on
        # all generations; keep f32 at small D where rounding isn't worth it.
        compute_dtype = jnp.bfloat16 if D >= 256 else jnp.float32
    itemsize = jnp.dtype(compute_dtype).itemsize
    obs_c = obs.astype(compute_dtype)
    w_c = w_cat.astype(compute_dtype)

    bt = _pick_batch_tile(B)
    grid_b = B // bt

    # Weight index_map is constant (0, 0); single-buffer it once it is large
    # enough to matter for VMEM (v7x has only 64 MiB physical). Kept
    # conditional so small shapes use the default double-buffered path.
    weight_bytes = D * two_a * itemsize
    if weight_bytes > (4 << 20):
        w_spec = pl.BlockSpec((D, two_a), lambda i: (0, 0),
                              pipeline_mode=pl.Buffered(1))
        n_w_bufs = 1
    else:
        w_spec = pl.BlockSpec((D, two_a), lambda i: (0, 0))
        n_w_bufs = 2

    # Explicit scoped-VMEM limit: default (16 MiB v5e / 32 MiB v6e, v7x) can
    # reject large, overhead-amortizing tiles before physical VMEM does.
    vmem_est = (
        2 * bt * D * itemsize            # obs (double-buffered)
        + n_w_bufs * weight_bytes        # fused weight
        + 2 * bt * A * 4                 # prev_log_std
        + 2 * bt * two_a * 4             # matmul output
        + 2 * bt * A * 4                 # squashed log_std output
    )
    vmem_limit = int(min(64 << 20, max(32 << 20, int(vmem_est * 1.5))))

    cost = pl.CostEstimate(
        flops=2 * B * D * two_a,
        transcendentals=B * A,
        bytes_accessed=(B * D * itemsize + weight_bytes + B * A * 4     # inputs
                        + B * two_a * 4 + B * A * 4),                   # outputs
    )

    mm_out, log_std = pl.pallas_call(
        _actor_slow_linear_kernel,
        out_shape=(jax.ShapeDtypeStruct((B, two_a), jnp.float32),
                   jax.ShapeDtypeStruct((B, A), jnp.float32)),
        grid=(grid_b,),
        in_specs=[
            pl.BlockSpec((bt, D), lambda i: (i, 0)),       # obs (batch-tiled)
            w_spec,                                        # fused weight (resident)
            pl.BlockSpec((bt, A), lambda i: (i, 0)),       # prev_log_std
        ],
        out_specs=(
            pl.BlockSpec((bt, two_a), lambda i: (i, 0)),   # [new_mean | new_log_std]
            pl.BlockSpec((bt, A), lambda i: (i, 0)),       # squashed log_std
        ),
        compiler_params=pltpu.CompilerParams(
            dimension_semantics=("parallel",),
            vmem_limit_bytes=vmem_limit),
        cost_estimate=cost,
    )(obs_c, w_c, prev_log_std)

    new_mean = mm_out[:, :A]
    new_log_std = mm_out[:, A:]

    # prev_mean is a pure pass-through in the module: return directly, no
    # HBM->VMEM->HBM round trip.
    mean = prev_mean
    return mean, log_std, [(new_mean, new_log_std)]


def _init_linear_weight(key, out_features, in_features):
    # Matches torch nn.Linear default init: U(-1/sqrt(in), 1/sqrt(in)).
    bound = 1.0 / jnp.sqrt(jnp.float32(in_features))
    return jax.random.uniform(key, (out_features, in_features),
                              dtype=jnp.float32, minval=-bound, maxval=bound)


if __name__ == "__main__":
    # Small synthetic shapes implied by the module:
    #   obs_dim (input_dim) = 32, action_dim = 8, batch = 8.
    B, D, A = 8, 32, 8

    key = jax.random.PRNGKey(0)
    k_obs, k_wm, k_wl, k_pm, k_pls = jax.random.split(key, 5)

    obs = jax.random.normal(k_obs, (B, D), dtype=jnp.float32)
    # PyTorch weights are [A, D]; fuse + transpose once at param-prep time.
    w_mean = _init_linear_weight(k_wm, A, D)
    w_logstd = _init_linear_weight(k_wl, A, D)
    w_cat = prepare_fused_weight(w_mean, w_logstd)

    # hidden_activations[-1] = (prev_mean, prev_log_std)
    prev_mean = jax.random.normal(k_pm, (B, A), dtype=jnp.float32)
    prev_log_std = jax.random.normal(k_pls, (B, A), dtype=jnp.float32)

    # Force the Pallas path so the kernel itself is exercised at toy shapes
    # (the auto dispatch would pick the XLA fallback here).
    mean, log_std, new_hidden = actor_slow_linear_forward(
        obs, w_cat, prev_mean, prev_log_std, use_pallas=True)
    new_mean, new_log_std = new_hidden[-1]
    jax.block_until_ready((mean, log_std, new_mean, new_log_std))

    # Reference check in plain JAX.
    ref_new_mean = obs @ jnp.transpose(w_mean)
    ref_new_log_std = obs @ jnp.transpose(w_logstd)
    ref_mean = prev_mean
    ref_log_std = LOG_STD_MIN + 0.5 * (LOG_STD_MAX - LOG_STD_MIN) * (
        jnp.tanh(prev_log_std) + 1.0)

    assert jnp.allclose(new_mean, ref_new_mean, atol=1e-5, rtol=1e-5)
    assert jnp.allclose(new_log_std, ref_new_log_std, atol=1e-5, rtol=1e-5)
    assert jnp.allclose(mean, ref_mean, atol=1e-6)
    assert jnp.allclose(log_std, ref_log_std, atol=1e-5, rtol=1e-5)

    # Sanity-check the auto-dispatch (XLA fallback) agrees as well.
    mean2, log_std2, new_hidden2 = actor_slow_linear_forward(
        obs, w_cat, prev_mean, prev_log_std)
    assert jnp.allclose(new_hidden2[-1][0], ref_new_mean, atol=1e-5, rtol=1e-5)
    assert jnp.allclose(log_std2, ref_log_std, atol=1e-5, rtol=1e-5)

    print("KERNEL_OK")
</pallas_src>

<mosaic_0001>
module attributes {stable_mosaic.version = 11 : i64} {
  func.func @_actor_slow_linear_kernel(%arg0: i32, %arg1: memref<8x32xf32, #tpu.memory_space<vmem>>, %arg2: memref<32x16xf32, #tpu.memory_space<vmem>>, %arg3: memref<8x8xf32, #tpu.memory_space<vmem>>, %arg4: memref<8x16xf32, #tpu.memory_space<vmem>>, %arg5: memref<8x8xf32, #tpu.memory_space<vmem>>) attributes {dimension_semantics = [#tpu.dimension_semantics<parallel>], iteration_bounds = array<i64: 1>, scalar_prefetch = 0 : i64, scratch_operands = 0 : i64, tpu.core_type = #tpu.core_type<tc>, window_params = [{transform_indices = @transform_0, window_bounds = array<i64: 8, 32>}, {pipeline_mode = #tpu.pipeline_mode<synchronous>, transform_indices = @transform_1, window_bounds = array<i64: 32, 16>}, {transform_indices = @transform_2, window_bounds = array<i64: 8, 8>}, {transform_indices = @transform_3, window_bounds = array<i64: 8, 16>}, {transform_indices = @transform_4, window_bounds = array<i64: 8, 8>}]} {
    %c0 = arith.constant 0 : index
    %c0_0 = arith.constant 0 : index
    %0 = vector.load %arg1[%c0, %c0_0] : memref<8x32xf32, #tpu.memory_space<vmem>>, vector<8x32xf32>
    %c0_1 = arith.constant 0 : index
    %c0_2 = arith.constant 0 : index
    %1 = vector.load %arg2[%c0_1, %c0_2] : memref<32x16xf32, #tpu.memory_space<vmem>>, vector<32x16xf32>
    %cst = arith.constant dense<0.000000e+00> : vector<8x16xf32>
    %2 = tpu.matmul %0, %1, %cst {dimension_numbers = #tpu.dot_dimension_numbers<[1], [0], [0], [1], [0, 0, 1, 1], [], []>} : vector<8x32xf32>, vector<32x16xf32>, vector<8x16xf32> -> vector<8x16xf32>
    %c0_3 = arith.constant 0 : index
    %c0_4 = arith.constant 0 : index
    %3 = vector.load %arg4[%c0_3, %c0_4] : memref<8x16xf32, #tpu.memory_space<vmem>>, vector<8x16xf32>
    tpu.vector_store %arg4[%c0_3, %c0_4], %2 {strides = array<i32>} : memref<8x16xf32, #tpu.memory_space<vmem>>, vector<8x16xf32>,
    %c0_5 = arith.constant 0 : index
    %c0_6 = arith.constant 0 : index
    %4 = vector.load %arg3[%c0_5, %c0_6] : memref<8x8xf32, #tpu.memory_space<vmem>>, vector<8x8xf32>
    %5 = math.tanh %4 : vector<8x8xf32>
    %cst_7 = arith.constant 1.000000e+00 : f32
    %6 = vector.broadcast %cst_7 : f32 to vector<8x8xf32>
    %7 = arith.addf %5, %6 : vector<8x8xf32>
    %cst_8 = arith.constant 3.500000e+00 : f32
    %8 = vector.broadcast %cst_8 : f32 to vector<8x8xf32>
    %9 = arith.mulf %8, %7 : vector<8x8xf32>
    %cst_9 = arith.constant -5.000000e+00 : f32
    %10 = vector.broadcast %cst_9 : f32 to vector<8x8xf32>
    %11 = arith.addf %10, %9 : vector<8x8xf32>
    %c0_10 = arith.constant 0 : index
    %c0_11 = arith.constant 0 : index
    %12 = vector.load %arg5[%c0_10, %c0_11] : memref<8x8xf32, #tpu.memory_space<vmem>>, vector<8x8xf32>
    tpu.vector_store %arg5[%c0_10, %c0_11], %11 {strides = array<i32>} : memref<8x8xf32, #tpu.memory_space<vmem>>, vector<8x8xf32>,
    return
  }
  func.func @transform_0(%arg0: i32) -> (i32, i32) {
    %c0_i32 = arith.constant 0 : i32
    %c0_i32_0 = arith.constant 0 : i32
    return %arg0, %c0_i32 : i32, i32
  }
  func.func @transform_1(%arg0: i32) -> (i32, i32) {
    %c0_i32 = arith.constant 0 : i32
    %c0_i32_0 = arith.constant 0 : i32
    %c0_i32_1 = arith.constant 0 : i32
    return %c0_i32, %c0_i32_0 : i32, i32
  }
  func.func @transform_2(%arg0: i32) -> (i32, i32) {
    %c0_i32 = arith.constant 0 : i32
    %c0_i32_0 = arith.constant 0 : i32
    return %arg0, %c0_i32 : i32, i32
  }
  func.func @transform_3(%arg0: i32) -> (i32, i32) {
    %c0_i32 = arith.constant 0 : i32
    %c0_i32_0 = arith.constant 0 : i32
    return %arg0, %c0_i32 : i32, i32
  }
  func.func @transform_4(%arg0: i32) -> (i32, i32) {
    %c0_i32 = arith.constant 0 : i32
    %c0_i32_0 = arith.constant 0 : i32
    return %arg0, %c0_i32 : i32, i32
  }
}

</mosaic_0001>

<llo_original>
// kernel: tpu_custom_call.1
$region0: #{tpu_custom_call.1}
  #allocation0 [shape = 'u32[]', space=smem, size = 0x4, offset = 0x4, fixed_abs, tag = 'smem constant byte address 0x4 - core index']
  #allocation1 [shape = 'u32[72,128]{1,0:T(1,128)}', space=vmem, size = 0x9000, scoped, tag = 'internal scratch']
  %s0 = inlined_call_operand.vmem [shape: f32[8,32], index: 0, kind: input, shape index: {}]
  %s1 = inlined_call_operand.vmem [shape: f32[32,16], index: 1, kind: input, shape index: {}]
  %s2 = inlined_call_operand.vmem [shape: f32[8,8], index: 2, kind: input, shape index: {}]
  %s3 = inlined_call_operand.hbm [shape: f32[8,16], index: 3, kind: output, shape index: {0}]
  %s4 = inlined_call_operand.hbm [shape: f32[8,8], index: 4, kind: output, shape index: {1}]
  %5 = xla_tuple %s3, %s4
  %s6 = sld [smem:[#allocation0]]
  $region30: #{tpu_custom_call.1} parent=0
    _
  %s8 = ssub.s32 1, %s6
  %s9 = scalar_select 0, %s8, %s6
  $region1: #{tpu_custom_call.1} parent=0
    #allocation2 [shape = 'u8[4096]{0}', space=vmem, size = 0x1000, scoped, tag = 'output window, operand 0, single buffered']
    #allocation3 [shape = 's32[1]{0}', space=sflag, size = 0x4, scoped, tag = 'scoped memory for tpu_custom_call.1']
    #allocation4 [shape = 'u8[4096]{0}', space=vmem, size = 0x1000, scoped, tag = 'output window, operand 1, single buffered']
    #allocation5 [shape = 's32[1]{0}', space=sflag, size = 0x4, scoped, tag = 'scoped memory for tpu_custom_call.1']
    %10 = vsyncpa [#allocation3], 0
    %11 = vsyncpa [#allocation5], 0
    // Predicated region
    $region2: #{tpu_custom_call.1} parent=1 // pred_check
      _
    $region3: #{tpu_custom_call.1} parent=1 // pred_check_branch
      %13 = sbr.rel (0) target = $region5
    $region4: #{tpu_custom_call.1} parent=1 // pred_region
      _
    $region5: #{tpu_custom_call.1} parent=1 // pred_fallthru
      _
    // Predicated region
    $region6: #{tpu_custom_call.1} parent=1 // pred_check
      _
    $region7: #{tpu_custom_call.1} parent=1 // pred_check_branch
      %15 = sbr.rel (0) target = $region9
    $region8: #{tpu_custom_call.1} parent=1 // pred_region
      _
    $region9: #{tpu_custom_call.1} parent=1 // pred_fallthru
      _
    // Predicated region
    $region10: #{tpu_custom_call.1} parent=1 // pred_check
      _
    $region11: #{tpu_custom_call.1} parent=1 // pred_check_branch
      %17 = sbr.rel (0) target = $region13
    $region12: #{tpu_custom_call.1} parent=1 // pred_region
      _
    $region13: #{tpu_custom_call.1} parent=1 // pred_fallthru
      _
    %v18 = vld [vmem:[%s0] sm:$0xff]
    %v19 = vld [vmem:[%s1] sm:$0xff]
    %v20 = vld [vmem:[%s1 + $0x8] sm:$0xff]
    %v21 = vld [vmem:[%s1 + $0x10] sm:$0xff]
    %v22 = vld [vmem:[%s1 + $0x18] sm:$0xff]
    %vm23 = vcmask 261120
    %v25 = vsel %vm23, %v18, 0
    %27 = vmatpush.msra.mxu0 0.0
    %28 = vmatpush.msra.mxu0 0.0
    %29 = vmatpush.msra.mxu0 0.0
    %30 = vmatpush.msra.mxu0 0.0
    %31 = vmatpush.msra.mxu0 0.0
    %32 = vmatpush.msra.mxu0 0.0
    %33 = vmatpush.msra.mxu0 0.0
    %34 = vmatpush.msra.mxu0 0.0
    %35 = vmatpush.msra.mxu0 0.0
    %36 = vmatpush.msra.mxu0 0.0
    %37 = vmatpush.msra.mxu0 0.0
    %38 = vmatpush.msra.mxu0 0.0
    %39 = vmatpush.msra.mxu0 %v22
    %40 = vmatpush.msra.mxu0 %v21
    %41 = vmatpush.msra.mxu0 %v20
    %42 = vmatpush.msra.mxu0 %v19
    %43 = vmatmul.f32.gmra.mxu0 %v25
    %v44 = vpop.f32.mrf.mxu0
    %v45 = vadd.f32 0.0, %v44
    %46 = vdwg.mxu0
    %vm47 = vcmask 130048
    %48 = vst.msk [vmem:[#allocation2] sm:$0xff] %vm47, %v45
    %v49 = vld [vmem:[%s2] sm:$0xff]
    %v50 = vtanh.pop %v49
    %v51 = vadd.f32 %v50, 1.0
    %v52 = vmul.f32 %v51, 3.5
    %v53 = vadd.f32 %v52, -5.0
    %vm54 = vcmask 64512
    %55 = vst.msk [vmem:[#allocation4] sm:$0xff] %vm54, %v53
    // Predicated region
    $region14: #{tpu_custom_call.1} parent=1 // pred_check
      _
    $region15: #{tpu_custom_call.1} parent=1 // pred_check_branch
      %57 = sbr.rel (0) target = $region17
    $region16: #{tpu_custom_call.1} parent=1 // pred_region
      %59 = vsyncadd [#allocation3], 0
      %s61 = sshll.u32 [#allocation2], 4
      %s62 = int_to_ptr.vmem [resolvable:$true] %s61
      %s63 = sshll.u32 %s3, 4
      %s64 = int_to_ptr.hbm [resolvable:$true] %s63
      %66 = dma.vmem_to_hbm [thread:$0]  %s62, 128, %s64, [#allocation3]
    $region17: #{tpu_custom_call.1} parent=1 // pred_fallthru
      _
    // Predicated region
    $region18: #{tpu_custom_call.1} parent=1 // pred_check
      _
    $region19: #{tpu_custom_call.1} parent=1 // pred_check_branch
      %68 = sbr.rel (0) target = $region21
    $region20: #{tpu_custom_call.1} parent=1 // pred_region
      %70 = vsyncadd [#allocation5], 0
      %s72 = sshll.u32 [#allocation4], 4
      %s73 = int_to_ptr.vmem [resolvable:$true] %s72
      %s74 = sshll.u32 %s4, 4
      %s75 = int_to_ptr.hbm [resolvable:$true] %s74
      %77 = dma.vmem_to_hbm [thread:$0]  %s73, 128, %s75, [#allocation5]
    $region21: #{tpu_custom_call.1} parent=1 // pred_fallthru
      _
    // Predicated region
    $region22: #{tpu_custom_call.1} parent=1 // pred_check
      _
    $region23: #{tpu_custom_call.1} parent=1 // pred_check_branch
      %79 = sbr.rel (0) target = $region25
    $region24: #{tpu_custom_call.1} parent=1 // pred_region
      %81 = dma.done [#allocation3], 128
    $region25: #{tpu_custom_call.1} parent=1 // pred_fallthru
      _
    // Predicated region
    $region26: #{tpu_custom_call.1} parent=1 // pred_check
      _
    $region27: #{tpu_custom_call.1} parent=1 // pred_check_branch
      %83 = sbr.rel (0) target = $region29
    $region28: #{tpu_custom_call.1} parent=1 // pred_region
      %85 = dma.done [#allocation5], 128
    $region29: #{tpu_custom_call.1} parent=1 // pred_fallthru
      _
    %86 = vsyncpa [#allocation3], 1
    %87 = vsyncpa [#allocation5], 1

</llo_original>
